<compile_context>
chip_gen: v7x
topology: tpu7x:2x2x1
jax: 0.10.0
libtpu: 0.0.40
codegen_flags: <defaults>
</compile_context>

<pallas_src>
import functools

import jax
import jax.numpy as jnp
from jax.experimental import pallas as pl
from jax.experimental.pallas import tpu as pltpu

_LANE = 128
_SUBLANE = 8


def _round_up(x, m):
    return ((x + m - 1) // m) * m


def _bf_decoder_kernel(z_ref, h_ref, wz_ref, wh_ref, b_ref,
                       pred_ref, dist_ref, *, max_n):
    # Two MXU contractions into one f32 accumulator (no lane-axis concat).
    acc = jnp.dot(z_ref[...], wz_ref[...], preferred_element_type=jnp.float32)
    acc = acc + jnp.dot(h_ref[...], wh_ref[...],
                        preferred_element_type=jnp.float32)
    acc = acc + b_ref[...]                                  # [TM, D_PAD] f32
    # Lane-dense predecessor store (width is a multiple of 128) plus a tiny
    # 1-lane distance store; both come straight out of the kernel.
    pred_ref[...] = acc[:, :pred_ref.shape[-1]].astype(pred_ref.dtype)
    dist_ref[...] = acc[:, max_n:max_n + 1].astype(dist_ref.dtype)


def prepare_bf_decoder_params(wp, bp, wd, bd, *, compute_dtype=None):
    """Fuse / transpose / lane-pad the two Linear layers ONCE (outside forward).

    wp: [max_N, 2H], bp: [max_N], wd: [1, 2H], bd: [1]
    Returns (w_z [H, D_PAD], w_h [H, D_PAD], b [1, D_PAD] (f32), max_N) with
    D_PAD = round_up(max_N + 1, 128).
    """
    max_n, two_h = wp.shape
    h = two_h // 2
    d_pad = _round_up(max_n + 1, _LANE)
    pad = d_pad - (max_n + 1)
    w = jnp.concatenate([wp, wd], axis=0).T                 # [2H, max_N+1]
    w = jnp.pad(w, ((0, 0), (0, pad)))                      # [2H, D_PAD]
    b = jnp.pad(jnp.concatenate([bp, bd]), (0, pad))
    b = b.reshape(1, d_pad).astype(jnp.float32)
    w_z, w_h = w[:h], w[h:]
    if compute_dtype is not None:
        w_z = w_z.astype(compute_dtype)
        w_h = w_h.astype(compute_dtype)
    return w_z, w_h, b, max_n


def _choose_tile_m(b_pad, h, d_pad, pred_pad, in_itemsize, out_itemsize,
                   vmem_budget_bytes, max_tile_m):
    # VMEM bytes per batch row, assuming double-buffered pipelined blocks.
    per_row = 2 * (2 * h) * in_itemsize                 # z + h input blocks
    per_row += 2 * (pred_pad + 1) * out_itemsize        # pred + dist outputs
    fixed = 2 * (2 * h * d_pad * in_itemsize + d_pad * 4)   # weights + bias
    budget = max(vmem_budget_bytes - fixed, 1 << 20)
    tm = int(budget // per_row)
    tm = max(_SUBLANE, min(tm, max_tile_m, b_pad))
    tm = (tm // _SUBLANE) * _SUBLANE
    # Prefer >= 2 grid steps so the "parallel" batch axis can actually shard
    # across both TensorCores on v7x (harmless on v5e/v6e).
    if tm >= b_pad and b_pad >= 2 * _SUBLANE:
        tm = _round_up(pl.cdiv(b_pad, 2), _SUBLANE)
    return max(tm, _SUBLANE)


def bf_decoder_forward(z, h, w_z, w_h, b, max_n, *,
                       compute_dtype=None,
                       vmem_budget_bytes=20 << 20,
                       max_tile_m=16384):
    """Pallas equivalent of BF_Decoder.forward.

    z, h           : [..., hidden_dim]
    w_z, w_h, b    : from prepare_bf_decoder_params
    Returns (predecessor_output [..., max_N], distance_output [..., 1]).
    """
    H = z.shape[-1]
    d_pad = w_z.shape[-1]
    pred_pad = min(_round_up(max(max_n, 1), _LANE), d_pad)
    lead = z.shape[:-1]
    out_dtype = z.dtype
    out_itemsize = jnp.dtype(out_dtype).itemsize

    z2 = z.reshape(-1, H)
    h2 = h.reshape(-1, H)
    if compute_dtype is not None:
        z2 = z2.astype(compute_dtype)
        h2 = h2.astype(compute_dtype)
        w_z = w_z.astype(compute_dtype)
        w_h = w_h.astype(compute_dtype)
    B = z2.shape[0]
    if B == 0:  # degenerate empty batch
        return (jnp.zeros((*lead, max_n), out_dtype),
                jnp.zeros((*lead, 1), out_dtype))

    # Pad the batch only to a sublane multiple; the last grid block may be
    # partial (grid = cdiv), so padding waste is bounded to < 8 rows.
    b_pad = _round_up(B, _SUBLANE)
    if b_pad != B:
        z2 = jnp.pad(z2, ((0, b_pad - B), (0, 0)))
        h2 = jnp.pad(h2, ((0, b_pad - B), (0, 0)))

    in_itemsize = jnp.dtype(z2.dtype).itemsize
    tm = _choose_tile_m(b_pad, H, d_pad, pred_pad, in_itemsize, out_itemsize,
                        vmem_budget_bytes, max_tile_m)
    grid = (pl.cdiv(b_pad, tm),)

    cost = pl.CostEstimate(
        flops=int(2 * b_pad * (2 * H) * d_pad),
        transcendentals=0,
        bytes_accessed=int(2 * b_pad * H * in_itemsize
                           + 2 * H * d_pad * in_itemsize
                           + d_pad * 4
                           + b_pad * (pred_pad + 1) * out_itemsize),
    )

    kernel = functools.partial(_bf_decoder_kernel, max_n=max_n)

    pred_full, dist_full = pl.pallas_call(
        kernel,
        out_shape=(jax.ShapeDtypeStruct((b_pad, pred_pad), out_dtype),
                   jax.ShapeDtypeStruct((b_pad, 1), out_dtype)),
        grid=grid,
        in_specs=[
            pl.BlockSpec((tm, H), lambda i: (i, 0)),          # z tile
            pl.BlockSpec((tm, H), lambda i: (i, 0)),          # h tile
            pl.BlockSpec((H, d_pad), lambda i: (0, 0)),       # w_z (constant)
            pl.BlockSpec((H, d_pad), lambda i: (0, 0)),       # w_h (constant)
            pl.BlockSpec((1, d_pad), lambda i: (0, 0)),       # bias (constant)
        ],
        out_specs=[pl.BlockSpec((tm, pred_pad), lambda i: (i, 0)),
                   pl.BlockSpec((tm, 1), lambda i: (i, 0))],
        compiler_params=pltpu.CompilerParams(
            dimension_semantics=("parallel",),
            vmem_limit_bytes=32 << 20,
        ),
        cost_estimate=cost,
    )(z2, h2, w_z, w_h, b)

    pred = pred_full[:B, :max_n].reshape(*lead, max_n)
    dist = dist_full[:B].reshape(*lead, 1)
    return pred, dist


def bf_decoder(z, h, wp, bp, wd, bd, *, compute_dtype=None):
    """Convenience wrapper matching the original (wp, bp, wd, bd) signature."""
    w_z, w_h, b, max_n = prepare_bf_decoder_params(
        wp, bp, wd, bd, compute_dtype=compute_dtype)
    return bf_decoder_forward(z, h, w_z, w_h, b, max_n,
                              compute_dtype=compute_dtype)


if __name__ == "__main__":
    hidden_dim = 32
    max_N = 16
    batch, nodes = 2, 8

    key = jax.random.PRNGKey(0)
    kz, kh, kwp, kbp, kwd, kbd = jax.random.split(key, 6)

    z = jax.random.normal(kz, (batch, nodes, hidden_dim), dtype=jnp.float32)
    h = jax.random.normal(kh, (batch, nodes, hidden_dim), dtype=jnp.float32)

    # Deterministic init mirroring nn.Linear (uniform(-1/sqrt(fan_in), +)).
    fan_in = 2 * hidden_dim
    bound = 1.0 / float(jnp.sqrt(jnp.float32(fan_in)))
    wp = jax.random.uniform(kwp, (max_N, 2 * hidden_dim), jnp.float32, -bound, bound)
    bp = jax.random.uniform(kbp, (max_N,), jnp.float32, -bound, bound)
    wd = jax.random.uniform(kwd, (1, 2 * hidden_dim), jnp.float32, -bound, bound)
    bd = jax.random.uniform(kbd, (1,), jnp.float32, -bound, bound)

    # One-time parameter fusion / padding (hoisted out of the forward path).
    w_z, w_h, b_comb, max_n = prepare_bf_decoder_params(wp, bp, wd, bd)
    fwd = jax.jit(functools.partial(bf_decoder_forward, max_n=max_n))

    pred, dist = fwd(z, h, w_z, w_h, b_comb)
    jax.block_until_ready((pred, dist))

    # Pure-JAX reference (matches the PyTorch module semantics, f32).
    cat = jnp.concatenate([z, h], axis=-1)
    pred_ref = cat @ wp.T + bp
    dist_ref = cat @ wd.T + bd
    assert pred.shape == (batch, nodes, max_N)
    assert dist.shape == (batch, nodes, 1)
    assert jnp.allclose(pred, pred_ref, atol=1e-5, rtol=1e-5)
    assert jnp.allclose(dist, dist_ref, atol=1e-5, rtol=1e-5)

    print("KERNEL_OK")
</pallas_src>

<mosaic_0001>
module attributes {stable_mosaic.version = 11 : i64} {
  func.func @_bf_decoder_kernel(%arg0: i32, %arg1: memref<8x32xf32, #tpu.memory_space<vmem>>, %arg2: memref<8x32xf32, #tpu.memory_space<vmem>>, %arg3: memref<32x128xf32, #tpu.memory_space<vmem>>, %arg4: memref<32x128xf32, #tpu.memory_space<vmem>>, %arg5: memref<1x128xf32, #tpu.memory_space<vmem>>, %arg6: memref<8x128xf32, #tpu.memory_space<vmem>>, %arg7: memref<8x1xf32, #tpu.memory_space<vmem>>) attributes {dimension_semantics = [#tpu.dimension_semantics<parallel>], iteration_bounds = array<i64: 2>, scalar_prefetch = 0 : i64, scratch_operands = 0 : i64, tpu.core_type = #tpu.core_type<tc>, window_params = [{transform_indices = @transform_0, window_bounds = array<i64: 8, 32>}, {transform_indices = @transform_1, window_bounds = array<i64: 8, 32>}, {pipeline_mode = #tpu.pipeline_mode<synchronous>, transform_indices = @transform_2, window_bounds = array<i64: 32, 128>}, {pipeline_mode = #tpu.pipeline_mode<synchronous>, transform_indices = @transform_3, window_bounds = array<i64: 32, 128>}, {pipeline_mode = #tpu.pipeline_mode<synchronous>, transform_indices = @transform_4, window_bounds = array<i64: 1, 128>}, {transform_indices = @transform_5, window_bounds = array<i64: 8, 128>}, {transform_indices = @transform_6, window_bounds = array<i64: 8, 1>}]} {
    %c0 = arith.constant 0 : index
    %c0_0 = arith.constant 0 : index
    %0 = vector.load %arg1[%c0, %c0_0] : memref<8x32xf32, #tpu.memory_space<vmem>>, vector<8x32xf32>
    %c0_1 = arith.constant 0 : index
    %c0_2 = arith.constant 0 : index
    %1 = vector.load %arg3[%c0_1, %c0_2] : memref<32x128xf32, #tpu.memory_space<vmem>>, vector<32x128xf32>
    %cst = arith.constant dense<0.000000e+00> : vector<8x128xf32>
    %2 = tpu.matmul %0, %1, %cst {dimension_numbers = #tpu.dot_dimension_numbers<[1], [0], [0], [1], [0, 0, 1, 1], [], []>} : vector<8x32xf32>, vector<32x128xf32>, vector<8x128xf32> -> vector<8x128xf32>
    %c0_3 = arith.constant 0 : index
    %c0_4 = arith.constant 0 : index
    %3 = vector.load %arg2[%c0_3, %c0_4] : memref<8x32xf32, #tpu.memory_space<vmem>>, vector<8x32xf32>
    %c0_5 = arith.constant 0 : index
    %c0_6 = arith.constant 0 : index
    %4 = vector.load %arg4[%c0_5, %c0_6] : memref<32x128xf32, #tpu.memory_space<vmem>>, vector<32x128xf32>
    %cst_7 = arith.constant dense<0.000000e+00> : vector<8x128xf32>
    %5 = tpu.matmul %3, %4, %cst_7 {dimension_numbers = #tpu.dot_dimension_numbers<[1], [0], [0], [1], [0, 0, 1, 1], [], []>} : vector<8x32xf32>, vector<32x128xf32>, vector<8x128xf32> -> vector<8x128xf32>
    %6 = arith.addf %2, %5 : vector<8x128xf32>
    %c0_8 = arith.constant 0 : index
    %c0_9 = arith.constant 0 : index
    %7 = vector.load %arg5[%c0_8, %c0_9] : memref<1x128xf32, #tpu.memory_space<vmem>>, vector<1x128xf32>
    %8 = vector.broadcast %7 : vector<1x128xf32> to vector<8x128xf32>
    %9 = arith.addf %6, %8 : vector<8x128xf32>
    %c0_10 = arith.constant 0 : index
    %c0_11 = arith.constant 0 : index
    %10 = vector.load %arg6[%c0_10, %c0_11] : memref<8x128xf32, #tpu.memory_space<vmem>>, vector<8x128xf32>
    tpu.vector_store %arg6[%c0_10, %c0_11], %9 {strides = array<i32>} : memref<8x128xf32, #tpu.memory_space<vmem>>, vector<8x128xf32>,
    %11 = vector.extract_strided_slice %9 {offsets = [0, 16], sizes = [8, 1], strides = [1, 1]} : vector<8x128xf32> to vector<8x1xf32>
    %c0_12 = arith.constant 0 : index
    %c0_13 = arith.constant 0 : index
    %12 = vector.load %arg7[%c0_12, %c0_13] : memref<8x1xf32, #tpu.memory_space<vmem>>, vector<8x1xf32>
    tpu.vector_store %arg7[%c0_12, %c0_13], %11 {strides = array<i32>} : memref<8x1xf32, #tpu.memory_space<vmem>>, vector<8x1xf32>,
    return
  }
  func.func @transform_0(%arg0: i32) -> (i32, i32) {
    %c0_i32 = arith.constant 0 : i32
    %c0_i32_0 = arith.constant 0 : i32
    return %arg0, %c0_i32 : i32, i32
  }
  func.func @transform_1(%arg0: i32) -> (i32, i32) {
    %c0_i32 = arith.constant 0 : i32
    %c0_i32_0 = arith.constant 0 : i32
    return %arg0, %c0_i32 : i32, i32
  }
  func.func @transform_2(%arg0: i32) -> (i32, i32) {
    %c0_i32 = arith.constant 0 : i32
    %c0_i32_0 = arith.constant 0 : i32
    %c0_i32_1 = arith.constant 0 : i32
    return %c0_i32, %c0_i32_0 : i32, i32
  }
  func.func @transform_3(%arg0: i32) -> (i32, i32) {
    %c0_i32 = arith.constant 0 : i32
    %c0_i32_0 = arith.constant 0 : i32
    %c0_i32_1 = arith.constant 0 : i32
    return %c0_i32, %c0_i32_0 : i32, i32
  }
  func.func @transform_4(%arg0: i32) -> (i32, i32) {
    %c0_i32 = arith.constant 0 : i32
    %c0_i32_0 = arith.constant 0 : i32
    %c0_i32_1 = arith.constant 0 : i32
    return %c0_i32, %c0_i32_0 : i32, i32
  }
  func.func @transform_5(%arg0: i32) -> (i32, i32) {
    %c0_i32 = arith.constant 0 : i32
    %c0_i32_0 = arith.constant 0 : i32
    return %arg0, %c0_i32 : i32, i32
  }
  func.func @transform_6(%arg0: i32) -> (i32, i32) {
    %c0_i32 = arith.constant 0 : i32
    %c0_i32_0 = arith.constant 0 : i32
    return %arg0, %c0_i32 : i32, i32
  }
}

</mosaic_0001>

<llo_original>
// kernel: bf_decoder_forward.1
$region0: #{bf_decoder_forward.1}
  #allocation0 [shape = 'u32[]', space=smem, size = 0x4, offset = 0x4, fixed_abs, tag = 'smem constant byte address 0x4 - core index']
  #allocation1 [shape = 'u32[144,128]{1,0:T(1,128)}', space=vmem, size = 0x12000, scoped, tag = 'internal scratch']
  %s0 = inlined_call_operand.hbm [shape: f32[16,32], index: 0, kind: input, shape index: {}]
  %s1 = inlined_call_operand.hbm [shape: f32[16,32], index: 1, kind: input, shape index: {}]
  %s2 = inlined_call_operand.hbm [shape: f32[32,128], index: 2, kind: input, shape index: {}]
  %s3 = inlined_call_operand.hbm [shape: f32[32,128], index: 3, kind: input, shape index: {}]
  %s4 = inlined_call_operand.vmem [shape: f32[1,128], index: 4, kind: input, shape index: {}]
  %s5 = inlined_call_operand.vmem [shape: f32[16,128], index: 5, kind: output, shape index: {0}]
  %s6 = inlined_call_operand.vmem [shape: f32[16,1], index: 6, kind: output, shape index: {1}]
  %7 = xla_tuple %s5, %s6
  %s8 = sld [smem:[#allocation0]]
  $region77: #{bf_decoder_forward.1} parent=0
    _
  %s10 = ssub.s32 1, %s8
  %s11 = scalar_select 0, %s10, %s8
  $region1: #{bf_decoder_forward.1} parent=0
    #allocation2 [shape = 'u8[8192]{0}', space=vmem, size = 0x2000, scoped, tag = 'input window, operand 0']
    #allocation3 [shape = 's32[2]{0}', space=sflag, size = 0x8, scoped, tag = 'scoped memory for bf_decoder_forward.1']
    #allocation4 [shape = 'u8[8192]{0}', space=vmem, size = 0x2000, scoped, tag = 'input window, operand 1']
    #allocation5 [shape = 's32[2]{0}', space=sflag, size = 0x8, scoped, tag = 'scoped memory for bf_decoder_forward.1']
    #allocation6 [shape = 'u8[16384]{0}', space=vmem, size = 0x4000, scoped, tag = 'input window, operand 2, single buffered']
    #allocation7 [shape = 'u8[16384]{0}', space=vmem, size = 0x4000, scoped, tag = 'input window, operand 3, single buffered']
    #allocation8 [shape = 's32[1]{0}', space=sflag, size = 0x4, scoped, tag = 'scoped memory for bf_decoder_forward.1']
    %12 = vsyncpa [#allocation3], 0
    %s13 = scalar_lea.sflag [#allocation3], 1
    %14 = vsyncpa %s13, 0
    %15 = vsyncpa [#allocation5], 0
    %s16 = scalar_lea.sflag [#allocation5], 1
    %17 = vsyncpa %s16, 0
    %18 = vsyncpa [#allocation8], 0
    loop: start=0, step=1, limit=4
    $region2: #{bf_decoder_forward.1} parent=1 // loop_pre_header
      _
    $region3: #{bf_decoder_forward.1} parent=1 // loop_header
      %s20 = sphi 0, %s24
      %p21 = scmp.ge.s32.totalorder %s20, 4
      %s30 = sphi 0, %s32
      %s33 = sphi 0, %s30
      %s34 = sphi 0, %s33
      %s50 = sphi 0, %s34
      %s56 = sphi 0, %s58
      %s59 = sphi 0, %s56
      %s60 = sphi 0, %s59
      %s76 = sphi 0, %s60
      %s80 = sphi 0, %s80
      %s82 = sphi 0, %s80
      %s83 = sphi 0, %s82
      %s97 = sphi 0, %s83
      %s101 = sphi 0, %s101
      %s103 = sphi 0, %s101
      %s104 = sphi 0, %s103
      %s118 = sphi 0, %s104
      %s122 = sphi 0, %s122
      %s124 = sphi 0, %s122
      %s125 = sphi 0, %s124
      %s139 = sphi 0, %s125
      %s145 = sphi 0, %s147
      %s148 = sphi 0, %s145
      %s149 = sphi 0, %s148
      %s165 = sphi 0, %s149
      %s171 = sphi 0, %s173
      %s174 = sphi 0, %s171
      %s175 = sphi 0, %s174
      %s191 = sphi 0, %s175
    $region4: #{bf_decoder_forward.1} parent=1 // loop_header_branch
      %23 = sbr.rel (%p21) target = $region8
    $region5: #{bf_decoder_forward.1} parent=1 // loop_body
      %s25 = ssub.s32 %s20, 1
      %s26 = ssub.s32 %s20, 2
      %s27 = sadd.s32 %s20, 1
      %s28 = ssub.s32 %s20, %s27
      %p29 = scmp.eq.s32.totalorder %s28, 0
      %s31 = sadd.s32 %s30, 1
      %s32 = scalar_select %p29, %s30, %s31
      %p35 = pneg %p29
      %p36 = scmp.eq.s32.totalorder %s20, 1
      %p37 = por %p35, %p36
      %p38 = scmp.ne.s32.totalorder %s30, %s33
      %p39 = scmp.eq.s32.totalorder %s20, 0
      %p40 = por %p38, %p39
      %p41 = scmp.ne.s32.totalorder %s30, %s33
      %p42 = scmp.eq.s32.totalorder %s25, 1
      %p43 = por %p41, %p42
      %p44 = scmp.ne.s32.totalorder %s33, %s34
      %p45 = scmp.eq.s32.totalorder %s25, 0
      %p46 = por %p44, %p45
      %p47 = scmp.ne.s32.totalorder %s33, %s34
      %p48 = scmp.eq.s32.totalorder %s26, 1
      %p49 = por %p47, %p48
      %p51 = scmp.ne.s32.totalorder %s34, %s50
      %p52 = scmp.eq.s32.totalorder %s26, 0
      %p53 = por %p51, %p52
      %s54 = ssub.s32 %s20, %s27
      %p55 = scmp.eq.s32.totalorder %s54, 0
      %s57 = sadd.s32 %s56, 1
      %s58 = scalar_select %p55, %s56, %s57
      %p61 = pneg %p55
      %p62 = scmp.eq.s32.totalorder %s20, 1
      %p63 = por %p61, %p62
      %p64 = scmp.ne.s32.totalorder %s56, %s59
      %p65 = scmp.eq.s32.totalorder %s20, 0
      %p66 = por %p64, %p65
      %p67 = scmp.ne.s32.totalorder %s56, %s59
      %p68 = scmp.eq.s32.totalorder %s25, 1
      %p69 = por %p67, %p68
      %p70 = scmp.ne.s32.totalorder %s59, %s60
      %p71 = scmp.eq.s32.totalorder %s25, 0
      %p72 = por %p70, %p71
      %p73 = scmp.ne.s32.totalorder %s59, %s60
      %p74 = scmp.eq.s32.totalorder %s26, 1
      %p75 = por %p73, %p74
      %p77 = scmp.ne.s32.totalorder %s60, %s76
      %p78 = scmp.eq.s32.totalorder %s26, 0
      %p79 = por %p77, %p78
      %s81 = sadd.s32 %s80, 1
      %p84 = scmp.eq.s32.totalorder %s20, 1
      %p85 = scmp.ne.s32.totalorder %s80, %s82
      %p86 = scmp.eq.s32.totalorder %s20, 0
      %p87 = por %p85, %p86
      %p88 = scmp.ne.s32.totalorder %s80, %s82
      %p89 = scmp.eq.s32.totalorder %s25, 1
      %p90 = por %p88, %p89
      %p91 = scmp.ne.s32.totalorder %s82, %s83
      %p92 = scmp.eq.s32.totalorder %s25, 0
      %p93 = por %p91, %p92
      %p94 = scmp.ne.s32.totalorder %s82, %s83
      %p95 = scmp.eq.s32.totalorder %s26, 1
      %p96 = por %p94, %p95
      %p98 = scmp.ne.s32.totalorder %s83, %s97
      %p99 = scmp.eq.s32.totalorder %s26, 0
      %p100 = por %p98, %p99
      %s102 = sadd.s32 %s101, 1
      %p105 = scmp.eq.s32.totalorder %s20, 1
      %p106 = scmp.ne.s32.totalorder %s101, %s103
      %p107 = scmp.eq.s32.totalorder %s20, 0
      %p108 = por %p106, %p107
      %p109 = scmp.ne.s32.totalorder %s101, %s103
      %p110 = scmp.eq.s32.totalorder %s25, 1
      %p111 = por %p109, %p110
      %p112 = scmp.ne.s32.totalorder %s103, %s104
      %p113 = scmp.eq.s32.totalorder %s25, 0
      %p114 = por %p112, %p113
      %p115 = scmp.ne.s32.totalorder %s103, %s104
      %p116 = scmp.eq.s32.totalorder %s26, 1
      %p117 = por %p115, %p116
      %p119 = scmp.ne.s32.totalorder %s104, %s118
      %p120 = scmp.eq.s32.totalorder %s26, 0
      %p121 = por %p119, %p120
      %s123 = sadd.s32 %s122, 1
      %p126 = scmp.eq.s32.totalorder %s20, 1
      %p127 = scmp.ne.s32.totalorder %s122, %s124
      %p128 = scmp.eq.s32.totalorder %s20, 0
      %p129 = por %p127, %p128
      %p130 = scmp.ne.s32.totalorder %s122, %s124
      %p131 = scmp.eq.s32.totalorder %s25, 1
      %p132 = por %p130, %p131
      %p133 = scmp.ne.s32.totalorder %s124, %s125
      %p134 = scmp.eq.s32.totalorder %s25, 0
      %p135 = por %p133, %p134
      %p136 = scmp.ne.s32.totalorder %s124, %s125
      %p137 = scmp.eq.s32.totalorder %s26, 1
      %p138 = por %p136, %p137
      %p140 = scmp.ne.s32.totalorder %s125, %s139
      %p141 = scmp.eq.s32.totalorder %s26, 0
      %p142 = por %p140, %p141
      %s143 = ssub.s32 %s20, %s27
      %p144 = scmp.eq.s32.totalorder %s143, 0
      %s146 = sadd.s32 %s145, 1
      %s147 = scalar_select %p144, %s145, %s146
      %p150 = pneg %p144
      %p151 = scmp.eq.s32.totalorder %s20, 1
      %p152 = por %p150, %p151
      %p153 = scmp.ne.s32.totalorder %s145, %s148
      %p154 = scmp.eq.s32.totalorder %s20, 0
      %p155 = por %p153, %p154
      %p156 = scmp.ne.s32.totalorder %s145, %s148
      %p157 = scmp.eq.s32.totalorder %s25, 1
      %p158 = por %p156, %p157
      %p159 = scmp.ne.s32.totalorder %s148, %s149
      %p160 = scmp.eq.s32.totalorder %s25, 0
      %p161 = por %p159, %p160
      %p162 = scmp.ne.s32.totalorder %s148, %s149
      %p163 = scmp.eq.s32.totalorder %s26, 1
      %p164 = por %p162, %p163
      %p166 = scmp.ne.s32.totalorder %s149, %s165
      %p167 = scmp.eq.s32.totalorder %s26, 0
      %p168 = por %p166, %p167
      %s169 = ssub.s32 %s20, %s27
      %p170 = scmp.eq.s32.totalorder %s169, 0
      %s172 = sadd.s32 %s171, 1
      %s173 = scalar_select %p170, %s171, %s172
      %p176 = pneg %p170
      %p177 = scmp.eq.s32.totalorder %s20, 1
      %p178 = por %p176, %p177
      %p179 = scmp.ne.s32.totalorder %s171, %s174
      %p180 = scmp.eq.s32.totalorder %s20, 0
      %p181 = por %p179, %p180
      %p182 = scmp.ne.s32.totalorder %s171, %s174
      %p183 = scmp.eq.s32.totalorder %s25, 1
      %p184 = por %p182, %p183
      %p185 = scmp.ne.s32.totalorder %s174, %s175
      %p186 = scmp.eq.s32.totalorder %s25, 0
      %p187 = por %p185, %p186
      %p188 = scmp.ne.s32.totalorder %s174, %s175
      %p189 = scmp.eq.s32.totalorder %s26, 1
      %p190 = por %p188, %p189
      %p192 = scmp.ne.s32.totalorder %s175, %s191
      %p193 = scmp.eq.s32.totalorder %s26, 0
      %p194 = por %p192, %p193
      %p195 = scmp.le.s32.totalorder 1, %s20
      %p196 = scmp.lt.s32.totalorder %s20, 3
      %p197 = pnand %p195, %p196
      %p198 = pneg %p197
      // Predicated region
      $region9: #{bf_decoder_forward.1} parent=5 // pred_check
        _
      $region10: #{bf_decoder_forward.1} parent=5 // pred_check_branch
        %200 = sbr.rel (%p197) target = $region12
      $region11: #{bf_decoder_forward.1} parent=5 // pred_region
        %s201 = ssub.s32 %s20, 1
        // Predicated region
        $region13: #{bf_decoder_forward.1} parent=11 // pred_check
          %p202 = pneg %p93
        $region14: #{bf_decoder_forward.1} parent=11 // pred_check_branch
          %204 = sbr.rel (%p202) target = $region16
        $region15: #{bf_decoder_forward.1} parent=11 // pred_region
          %s206 = ssub.s32 512, 512
          %207 = vsyncadd [#allocation5], %s206
          %s208 = sshll.u32 [#allocation6], 4
          %s209 = int_to_ptr.vmem [resolvable:$true] %s208
          %214 = dma.hbm_to_vmem [thread:$0]  %s2, 512, %s209, [#allocation5], 128, 128, 8
        $region16: #{bf_decoder_forward.1} parent=11 // pred_fallthru
          _
        // Predicated region
        $region17: #{bf_decoder_forward.1} parent=11 // pred_check
          %p215 = pneg %p114
        $region18: #{bf_decoder_forward.1} parent=11 // pred_check_branch
          %217 = sbr.rel (%p215) target = $region20
        $region19: #{bf_decoder_forward.1} parent=11 // pred_region
          %s219 = ssub.s32 512, 512
          %220 = vsyncadd [#allocation8], %s219
          %s221 = sshll.u32 [#allocation7], 4
          %s222 = int_to_ptr.vmem [resolvable:$true] %s221
          %227 = dma.hbm_to_vmem [thread:$0]  %s3, 512, %s222, [#allocation8], 128, 128, 8
        $region20: #{bf_decoder_forward.1} parent=11 // pred_fallthru
          _
        // Predicated region
        $region21: #{bf_decoder_forward.1} parent=11 // pred_check
          %p228 = pneg %p135
        $region22: #{bf_decoder_forward.1} parent=11 // pred_check_branch
          %230 = sbr.rel (%p228) target = $region24
        $region23: #{bf_decoder_forward.1} parent=11 // pred_region
          _
        $region24: #{bf_decoder_forward.1} parent=11 // pred_fallthru
          _
      $region12: #{bf_decoder_forward.1} parent=5 // pred_fallthru
        _
      %p231 = scmp.lt.s32.totalorder %s20, 2
      // Predicated region
      $region25: #{bf_decoder_forward.1} parent=5 // pred_check
        %p232 = pneg %p231
      $region26: #{bf_decoder_forward.1} parent=5 // pred_check_branch
        %234 = sbr.rel (%p232) target = $region28
      $region27: #{bf_decoder_forward.1} parent=5 // pred_region
        // Predicated region
        $region29: #{bf_decoder_forward.1} parent=27 // pred_check
          %p235 = pneg %p40
        $region30: #{bf_decoder_forward.1} parent=27 // pred_check_branch
          %237 = sbr.rel (%p235) target = $region32
        $region31: #{bf_decoder_forward.1} parent=27 // pred_region
          %s238 = sand.u32 %s30, 1
          %s239 = scalar_lea.sflag [#allocation3], %s238
          %s240 = sand.u32 %s30, 1
          %s241 = smul.addr %s240, 8
          %s242 = scalar_lea.vmem [#allocation2], %s241
          %s244 = ssub.s32 128, 128
          %245 = vsyncadd %s239, %s244
          %s246 = smul.addr %s20, 128
          %s247 = scalar_lea.hbm %s0, %s246
          %s249 = sshll.u32 %s242, 4
          %s250 = int_to_ptr.vmem [resolvable:$true] %s249
          %252 = dma.hbm_to_vmem [thread:$0]  %s247, 128, %s250, %s239
        $region32: #{bf_decoder_forward.1} parent=27 // pred_fallthru
          _
        // Predicated region
        $region33: #{bf_decoder_forward.1} parent=27 // pred_check
          %p253 = pneg %p66
        $region34: #{bf_decoder_forward.1} parent=27 // pred_check_branch
          %255 = sbr.rel (%p253) target = $region36
        $region35: #{bf_decoder_forward.1} parent=27 // pred_region
          %s256 = sand.u32 %s20, 1
          %s257 = scalar_lea.sflag [#allocation5], %s256
          %s258 = sand.u32 %s56, 1
          %s259 = smul.addr %s258, 8
          %s260 = scalar_lea.vmem [#allocation4], %s259
          %s262 = ssub.s32 128, 128
          %263 = vsyncadd %s257, %s262
          %s264 = smul.addr %s20, 128
          %s265 = scalar_lea.hbm %s1, %s264
          %s267 = sshll.u32 %s260, 4
          %s268 = int_to_ptr.vmem [resolvable:$true] %s267
          %270 = dma.hbm_to_vmem [thread:$0]  %s265, 128, %s268, %s257
        $region36: #{bf_decoder_forward.1} parent=27 // pred_fallthru
          _
      $region28: #{bf_decoder_forward.1} parent=5 // pred_fallthru
        _
      %p271 = scmp.le.s32.totalorder 1, %s20
      %p272 = scmp.lt.s32.totalorder %s20, 3
      %p273 = pnand %p271, %p272
      %p274 = pneg %p273
      // Predicated region
      $region37: #{bf_decoder_forward.1} parent=5 // pred_check
        _
      $region38: #{bf_decoder_forward.1} parent=5 // pred_check_branch
        %276 = sbr.rel (%p273) target = $region40
      $region39: #{bf_decoder_forward.1} parent=5 // pred_region
        %s277 = ssub.s32 %s20, 1
        %s278 = sand.u32 %s33, 1
        %s279 = scalar_lea.sflag [#allocation3], %s278
        %s280 = sand.u32 %s33, 1
        %s281 = smul.addr %s280, 8
        %s282 = scalar_lea.vmem [#allocation2], %s281
        // Predicated region
        $region41: #{bf_decoder_forward.1} parent=39 // pred_check
          %p283 = pneg %p46
        $region42: #{bf_decoder_forward.1} parent=39 // pred_check_branch
          %285 = sbr.rel (%p283) target = $region44
        $region43: #{bf_decoder_forward.1} parent=39 // pred_region
          %286 = dma.done %s279, 128
        $region44: #{bf_decoder_forward.1} parent=39 // pred_fallthru
          _
        %s287 = sand.u32 %s25, 1
        %s288 = scalar_lea.sflag [#allocation5], %s287
        %s289 = sand.u32 %s59, 1
        %s290 = smul.addr %s289, 8
        %s291 = scalar_lea.vmem [#allocation4], %s290
        // Predicated region
        $region45: #{bf_decoder_forward.1} parent=39 // pred_check
          %p292 = pneg %p72
        $region46: #{bf_decoder_forward.1} parent=39 // pred_check_branch
          %294 = sbr.rel (%p292) target = $region48
        $region47: #{bf_decoder_forward.1} parent=39 // pred_region
          %295 = dma.done %s288, 128
        $region48: #{bf_decoder_forward.1} parent=39 // pred_fallthru
          _
        // Predicated region
        $region49: #{bf_decoder_forward.1} parent=39 // pred_check
          %p296 = pneg %p93
        $region50: #{bf_decoder_forward.1} parent=39 // pred_check_branch
          %298 = sbr.rel (%p296) target = $region52
        $region51: #{bf_decoder_forward.1} parent=39 // pred_region
          %299 = dma.done [#allocation5], 512
        $region52: #{bf_decoder_forward.1} parent=39 // pred_fallthru
          _
        // Predicated region
        $region53: #{bf_decoder_forward.1} parent=39 // pred_check
          %p300 = pneg %p114
        $region54: #{bf_decoder_forward.1} parent=39 // pred_check_branch
          %302 = sbr.rel (%p300) target = $region56
        $region55: #{bf_decoder_forward.1} parent=39 // pred_region
          %303 = dma.done [#allocation8], 512
        $region56: #{bf_decoder_forward.1} parent=39 // pred_fallthru
          _
        %s304 = sand.u32 %s33, 1
        %s305 = scalar_lea.sflag [#allocation3], %s304
        %s306 = sand.u32 %s33, 1
        %s307 = smul.addr %s306, 8
        %s308 = scalar_lea.vmem [#allocation2], %s307
        %p309 = pneg %p46
        %p310 = pneg %p43
        %s311 = sand.u32 %s25, 1
        %s312 = scalar_lea.sflag [#allocation5], %s311
        %s313 = sand.u32 %s59, 1
        %s314 = smul.addr %s313, 8
        %s315 = scalar_lea.vmem [#allocation4], %s314
        %p316 = pneg %p72
        %p317 = pneg %p69
        %p318 = pneg %p93
        %p319 = pneg %p90
        %p320 = pneg %p114
        %p321 = pneg %p111
        %p322 = pneg %p135
        %p323 = pneg %p132
        %p324 = pneg %p161
        %p325 = pneg %p158
        %p326 = scmp.lt.s32.totalorder %s25, 1
        %s327 = scalar_select %p326, %s25, 1
        %s328 = smul.addr %s327, 8
        %s329 = scalar_lea.vmem %s5, %s328
        %p330 = pneg %p187
        %p331 = pneg %p184
        %p332 = scmp.lt.s32.totalorder %s25, 1
        %s333 = scalar_select %p332, %s25, 1
        %s334 = smul.addr %s333, 8
        %s335 = scalar_lea.vmem %s6, %s334
        %p336 = scmp.lt.s32.totalorder %s25, 1
        %s337 = scalar_select %p336, %s25, 1
        %s338 = smul.addr %s337, 8
        %s339 = scalar_lea.vmem %s5, %s338
        %p340 = scmp.lt.s32.totalorder %s25, 1
        %s341 = scalar_select %p340, %s25, 1
        %s342 = smul.addr %s341, 8
        %s343 = scalar_lea.vmem %s6, %s342
        %v344 = vld [vmem:[%s282] sm:$0xff]
        %v345 = vld [vmem:[#allocation6] sm:$0xff]
        %v346 = vld [vmem:[#allocation6 + $0x8] sm:$0xff]
        %v347 = vld [vmem:[#allocation6 + $0x10] sm:$0xff]
        %v348 = vld [vmem:[#allocation6 + $0x18] sm:$0xff]
        %v349 = vld [vmem:[%s291] sm:$0xff]
        %v350 = vld [vmem:[#allocation7] sm:$0xff]
        %v351 = vld [vmem:[#allocation7 + $0x8] sm:$0xff]
        %v352 = vld [vmem:[#allocation7 + $0x10] sm:$0xff]
        %v353 = vld [vmem:[#allocation7 + $0x18] sm:$0xff]
        %vm354 = vcmask 261120
        %v356 = vsel %vm354, %v349, 0
        %358 = vmatprep.subr.mxu0 0.0
        %359 = vmatpush1.msra.mxu0 %v350
        %360 = vmatprep.subr.mxu0 0.0
        %361 = vmatpush1.msra.mxu0 %v351
        %362 = vmatprep.subr.mxu0 0.0
        %363 = vmatpush1.msra.mxu0 %v352
        %364 = vmatprep.subr.mxu0 0.0
        %365 = vmatpush1.msra.mxu0 %v353
        %366 = vmatprep.subr.mxu0 0.0
        %367 = vmatpush1.msra.mxu0 0.0
        %368 = vmatprep.subr.mxu0 0.0
        %369 = vmatpush1.msra.mxu0 0.0
        %370 = vmatprep.subr.mxu0 0.0
        %371 = vmatpush1.msra.mxu0 0.0
        %372 = vmatprep.subr.mxu0 0.0
        %373 = vmatpush1.msra.mxu0 0.0
        %374 = vmatprep.subr.mxu0 0.0
        %375 = vmatpush1.msra.mxu0 0.0
        %376 = vmatprep.subr.mxu0 0.0
        %377 = vmatpush1.msra.mxu0 0.0
        %378 = vmatprep.subr.mxu0 0.0
        %379 = vmatpush1.msra.mxu0 0.0
        %380 = vmatprep.subr.mxu0 0.0
        %381 = vmatpush1.msra.mxu0 0.0
        %382 = vmatprep.subr.mxu0 0.0
        %383 = vmatpush1.msra.mxu0 0.0
        %384 = vmatprep.subr.mxu0 0.0
        %385 = vmatpush1.msra.mxu0 0.0
        %386 = vmatprep.subr.mxu0 0.0
        %387 = vmatpush1.msra.mxu0 0.0
        %388 = vmatprep.subr.mxu0 0.0
        %389 = vmatpush1.msra.mxu0 0.0
        %390 = vmatprep.subr.mxu0 0.0
        %391 = vmatpush1.msra.mxu0 0.0
        %392 = vmatprep.subr.mxu0 0.0
        %393 = vmatpush1.msra.mxu0 0.0
        %394 = vmatprep.subr.mxu0 0.0
        %395 = vmatpush1.msra.mxu0 0.0
        %396 = vmatprep.subr.mxu0 0.0
        %397 = vmatpush1.msra.mxu0 0.0
        %398 = vmatprep.subr.mxu0 0.0
        %399 = vmatpush1.msra.mxu0 0.0
        %400 = vmatprep.subr.mxu0 0.0
        %401 = vmatpush1.msra.mxu0 0.0
        %402 = vmatprep.subr.mxu0 0.0
        %403 = vmatpush1.msra.mxu0 0.0
        %404 = vmatprep.subr.mxu0 0.0
        %405 = vmatpush1.msra.mxu0 0.0
        %406 = vmatprep.subr.mxu0 0.0
        %407 = vmatpush1.msra.mxu0 0.0
        %408 = vmatprep.subr.mxu0 0.0
        %409 = vmatpush1.msra.mxu0 0.0
        %410 = vmatprep.subr.mxu0 0.0
        %411 = vmatpush1.msra.mxu0 0.0
        %412 = vmatprep.subr.mxu0 0.0
        %413 = vmatpush1.msra.mxu0 0.0
        %414 = vmatprep.subr.mxu0 0.0
        %415 = vmatpush1.msra.mxu0 0.0
        %416 = vmatprep.subr.mxu0 0.0
        %417 = vmatpush1.msra.mxu0 0.0
        %418 = vmatprep.subr.mxu0 0.0
        %419 = vmatpush1.msra.mxu0 0.0
        %420 = vmatprep.subr.mxu0 0.0
        %421 = vmatpush1.msra.mxu0 0.0
        %422 = vmatprep.mubr.f32.mxu0 0.0
        %423 = vmatmul.mubr.f32.gmra.mrb[0].mxu0 %v356
        %v424 = vpop.f32.mrb[0].mxu0
        %v425 = vadd.f32 0.0, %v424
        %v426 = vpop.f32.mrb[0].mxu0
        %427 = vdwg.mxu0
        %v429 = vsel %vm354, %v344, 0
        %431 = vmatprep.subr.mxu0 0.0
        %432 = vmatpush1.msra.mxu0 %v345
        %433 = vmatprep.subr.mxu0 0.0
        %434 = vmatpush1.msra.mxu0 %v346
        %435 = vmatprep.subr.mxu0 0.0
        %436 = vmatpush1.msra.mxu0 %v347
        %437 = vmatprep.subr.mxu0 0.0
        %438 = vmatpush1.msra.mxu0 %v348
        %439 = vmatprep.subr.mxu0 0.0
        %440 = vmatpush1.msra.mxu0 0.0
        %441 = vmatprep.subr.mxu0 0.0
        %442 = vmatpush1.msra.mxu0 0.0
        %443 = vmatprep.subr.mxu0 0.0
        %444 = vmatpush1.msra.mxu0 0.0
        %445 = vmatprep.subr.mxu0 0.0
        %446 = vmatpush1.msra.mxu0 0.0
        %447 = vmatprep.subr.mxu0 0.0
        %448 = vmatpush1.msra.mxu0 0.0
        %449 = vmatprep.subr.mxu0 0.0
        %450 = vmatpush1.msra.mxu0 0.0
        %451 = vmatprep.subr.mxu0 0.0
        %452 = vmatpush1.msra.mxu0 0.0
        %453 = vmatprep.subr.mxu0 0.0
        %454 = vmatpush1.msra.mxu0 0.0
        %455 = vmatprep.subr.mxu0 0.0
        %456 = vmatpush1.msra.mxu0 0.0
        %457 = vmatprep.subr.mxu0 0.0
        %458 = vmatpush1.msra.mxu0 0.0
        %459 = vmatprep.subr.mxu0 0.0
        %460 = vmatpush1.msra.mxu0 0.0
        %461 = vmatprep.subr.mxu0 0.0
        %462 = vmatpush1.msra.mxu0 0.0
        %463 = vmatprep.subr.mxu0 0.0
        %464 = vmatpush1.msra.mxu0 0.0
        %465 = vmatprep.subr.mxu0 0.0
        %466 = vmatpush1.msra.mxu0 0.0
        %467 = vmatprep.subr.mxu0 0.0
        %468 = vmatpush1.msra.mxu0 0.0
        %469 = vmatprep.subr.mxu0 0.0
        %470 = vmatpush1.msra.mxu0 0.0
        %471 = vmatprep.subr.mxu0 0.0
        %472 = vmatpush1.msra.mxu0 0.0
        %473 = vmatprep.subr.mxu0 0.0
        %474 = vmatpush1.msra.mxu0 0.0
        %475 = vmatprep.subr.mxu0 0.0
        %476 = vmatpush1.msra.mxu0 0.0
        %477 = vmatprep.subr.mxu0 0.0
        %478 = vmatpush1.msra.mxu0 0.0
        %479 = vmatprep.subr.mxu0 0.0
        %480 = vmatpush1.msra.mxu0 0.0
        %481 = vmatprep.subr.mxu0 0.0
        %482 = vmatpush1.msra.mxu0 0.0
        %483 = vmatprep.subr.mxu0 0.0
        %484 = vmatpush1.msra.mxu0 0.0
        %485 = vmatprep.subr.mxu0 0.0
        %486 = vmatpush1.msra.mxu0 0.0
        %487 = vmatprep.subr.mxu0 0.0
        %488 = vmatpush1.msra.mxu0 0.0
        %489 = vmatprep.subr.mxu0 0.0
        %490 = vmatpush1.msra.mxu0 0.0
        %491 = vmatprep.subr.mxu0 0.0
        %492 = vmatpush1.msra.mxu0 0.0
        %493 = vmatprep.subr.mxu0 0.0
        %494 = vmatpush1.msra.mxu0 0.0
        %495 = vmatprep.mubr.f32.mxu0 0.0
        %496 = vmatmul.mubr.f32.gmra.mrb[0].mxu0 %v429
        %v497 = vpop.f32.mrb[0].mxu0
        %v498 = vadd.f32 %v425, %v497
        %v499 = vpop.f32.mrb[0].mxu0
        %500 = vdwg.mxu0
        %v501 = vld [vmem:[%s4] sm:$0x1]
        %v503 = vlaneseq
        %v504 = vshrl.u32 %v503, 7
        %v505 = vsub.s32 0, %v504
        %v506 = vrot.slane %v501, %v505
        %v508 = vadd.f32 %v498, %v506
        %509 = vst [vmem:[%s339] sm:$0xff] %v508
        %511 = vrot.lane.b32.xlu0 %v508, 112
        %v512 = vpop.permute.xlu0 %511
        %vm514 = vcmask 7168
        %515 = vst.msk [vmem:[%s343] sm:$0xff] %vm514, %v512
        %p516 = scmp.lt.s32.totalorder %s25, 1
        %s517 = scalar_select %p516, %s25, 1
        %s518 = smul.addr %s517, 8
        %s519 = scalar_lea.vmem %s5, %s518
        %p520 = scmp.lt.s32.totalorder %s25, 1
        %s521 = scalar_select %p520, %s25, 1
        %s522 = smul.addr %s521, 8
        %s523 = scalar_lea.vmem %s6, %s522
        // Predicated region
        $region57: #{bf_decoder_forward.1} parent=39 // pred_check
          %p524 = pneg %p158
        $region58: #{bf_decoder_forward.1} parent=39 // pred_check_branch
          %526 = sbr.rel (%p524) target = $region60
        $region59: #{bf_decoder_forward.1} parent=39 // pred_region
          _
        $region60: #{bf_decoder_forward.1} parent=39 // pred_fallthru
          _
        // Predicated region
        $region61: #{bf_decoder_forward.1} parent=39 // pred_check
          %p527 = pneg %p184
        $region62: #{bf_decoder_forward.1} parent=39 // pred_check_branch
          %529 = sbr.rel (%p527) target = $region64
        $region63: #{bf_decoder_forward.1} parent=39 // pred_region
          _
        $region64: #{bf_decoder_forward.1} parent=39 // pred_fallthru
          _
      $region40: #{bf_decoder_forward.1} parent=5 // pred_fallthru
        _
      %p530 = scmp.le.s32.totalorder 2, %s20
      // Predicated region
      $region65: #{bf_decoder_forward.1} parent=5 // pred_check
        %p531 = pneg %p530
      $region66: #{bf_decoder_forward.1} parent=5 // pred_check_branch
        %533 = sbr.rel (%p531) target = $region68
      $region67: #{bf_decoder_forward.1} parent=5 // pred_region
        %s534 = ssub.s32 %s20, 2
        // Predicated region
        $region69: #{bf_decoder_forward.1} parent=67 // pred_check
          %p535 = pneg %p164
        $region70: #{bf_decoder_forward.1} parent=67 // pred_check_branch
          %537 = sbr.rel (%p535) target = $region72
        $region71: #{bf_decoder_forward.1} parent=67 // pred_region
          %p538 = scmp.lt.s32.totalorder %s26, 1
          %s539 = scalar_select %p538, %s26, 1
          %s540 = smul.addr %s539, 8
          %s541 = scalar_lea.vmem %s5, %s540
        $region72: #{bf_decoder_forward.1} parent=67 // pred_fallthru
          _
        // Predicated region
        $region73: #{bf_decoder_forward.1} parent=67 // pred_check
          %p542 = pneg %p190
        $region74: #{bf_decoder_forward.1} parent=67 // pred_check_branch
          %544 = sbr.rel (%p542) target = $region76
        $region75: #{bf_decoder_forward.1} parent=67 // pred_region
          %p545 = scmp.lt.s32.totalorder %s26, 1
          %s546 = scalar_select %p545, %s26, 1
          %s547 = smul.addr %s546, 8
          %s548 = scalar_lea.vmem %s6, %s547
        $region76: #{bf_decoder_forward.1} parent=67 // pred_fallthru
          _
      $region68: #{bf_decoder_forward.1} parent=5 // pred_fallthru
        _
    $region6: #{bf_decoder_forward.1} parent=1 // loop_footer
      %s24 = sadd.s32 1, %s20
    $region7: #{bf_decoder_forward.1} parent=1 // loop_footer_branch
      %19 = sbr.rel target = $region3
    $region8: #{bf_decoder_forward.1} parent=1 // loop_exit
      _
    %549 = vsyncpa [#allocation3], 1
    %s550 = scalar_lea.sflag [#allocation3], 1
    %551 = vsyncpa %s550, 1
    %552 = vsyncpa [#allocation5], 1
    %s553 = scalar_lea.sflag [#allocation5], 1
    %554 = vsyncpa %s553, 1
    %555 = vsyncpa [#allocation8], 1

</llo_original>
